<compile_context>
chip_gen: v7x
topology: tpu7x:2x2x1
jax: 0.10.0
libtpu: 0.0.40
codegen_flags: <defaults>
</compile_context>

<pallas_src>
import jax
import jax.numpy as jnp
from jax.experimental import pallas as pl
from jax.experimental.pallas import tpu as pltpu

INPUTS, H1, H2, H3, OUTPUT = 37, 120, 120, 120, 12
LANE = 128              # hidden feature dims are zero-padded to the 128-lane width
DEFAULT_TILE_B = 2048   # batch rows per grid step (sweep 1024-4096)


def _mlp_kernel(x_ref, w1_ref, b1_ref, w2_ref, b2_ref, w3_ref, b3_ref,
                wo_ref, bo_ref, o_ref):
    # MXU matmuls with bf16 operands and f32 accumulation; bias add + ReLU on
    # the VPU in f32.  Hidden lanes 120..127 are exactly zero throughout
    # (zero-padded weight rows/cols and biases, preserved by ReLU).
    x = x_ref[...].astype(jnp.bfloat16)
    h = jnp.dot(x, w1_ref[...], preferred_element_type=jnp.float32) + b1_ref[...]
    h = jnp.maximum(h, 0.0)
    h = jnp.dot(h.astype(jnp.bfloat16), w2_ref[...],
                preferred_element_type=jnp.float32) + b2_ref[...]
    h = jnp.maximum(h, 0.0)
    h = jnp.dot(h.astype(jnp.bfloat16), w3_ref[...],
                preferred_element_type=jnp.float32) + b3_ref[...]
    h = jnp.maximum(h, 0.0)
    y = jnp.dot(h.astype(jnp.bfloat16), wo_ref[...],
                preferred_element_type=jnp.float32) + bo_ref[...]
    o_ref[...] = y.astype(o_ref.dtype)      # narrow (tile_b, 12) store


def _round_up(n, m):
    return ((n + m - 1) // m) * m


def prepare_params(params):
    """One-time host-side packing of weights/biases for the kernel.

    Hidden dims (120) are zero-padded to 128 lanes; the input dim (37) and the
    output dim (12) stay narrow.  Weights are cast to bf16 (MXU-native), biases
    stay f32.  Weights are stored (in_features, out_features): y = x @ W + b.
    NOTE: correctness relies on the padded rows/cols staying exactly zero."""
    def pack_w(w, rows, cols):
        out = jnp.zeros((rows, cols), jnp.float32)
        out = out.at[:w.shape[0], :w.shape[1]].set(w)
        return out.astype(jnp.bfloat16)

    def pack_b(b, cols):
        out = jnp.zeros((1, cols), jnp.float32)
        return out.at[:, :b.shape[1]].set(b)

    return {
        "w1": pack_w(params["w1"], INPUTS, LANE), "b1": pack_b(params["b1"], LANE),
        "w2": pack_w(params["w2"], LANE, LANE),   "b2": pack_b(params["b2"], LANE),
        "w3": pack_w(params["w3"], LANE, LANE),   "b3": pack_b(params["b3"], LANE),
        "wo": pack_w(params["wo"], LANE, OUTPUT), "bo": pack_b(params["bo"], OUTPUT),
    }


def _batch_axis_semantics(num_tiles):
    # v7x has 2 TensorCores per chip: CORE_PARALLEL shards the batch grid axis
    # across them.  On single-TC chips "parallel" vs "arbitrary" does not change
    # codegen, so just use "arbitrary" there.
    if num_tiles >= 2:
        try:
            kind = jax.devices()[0].device_kind.lower()
            if "v7" in kind or "7x" in kind:
                return (pltpu.CORE_PARALLEL,)
        except Exception:
            pass
    return ("arbitrary",)


def initial_policy_forward(x, packed_params, *, tile_b=DEFAULT_TILE_B):
    """x: (B, 37) float32; packed_params from prepare_params().  Returns (B, 12)."""
    # TODO(synk): for the per-step B=8 control-loop usage, amortize the weight
    # loads (batch several policy steps into one pallas_call via an extra grid
    # axis, or cross-call weight prefetch) instead of re-DMA'ing them per call.
    B = x.shape[0]
    b_pad = _round_up(B, 8)                          # pad batch to sublanes only
    tile_b = max(8, _round_up(min(tile_b, b_pad), 8))
    num_tiles = pl.cdiv(b_pad, tile_b)               # ragged last tile is masked

    x_in = x if b_pad == B else jnp.zeros((b_pad, INPUTS), x.dtype).at[:B].set(x)

    # Narrow input/output blocks are legal because the last dim equals the full
    # array dim; weights/biases use constant index maps -> VMEM-resident.
    x_spec = pl.BlockSpec((tile_b, INPUTS), lambda i: (i, 0))
    w1_spec = pl.BlockSpec((INPUTS, LANE), lambda i: (0, 0))
    wh_spec = pl.BlockSpec((LANE, LANE), lambda i: (0, 0))
    wo_spec = pl.BlockSpec((LANE, OUTPUT), lambda i: (0, 0))
    bh_spec = pl.BlockSpec((1, LANE), lambda i: (0, 0))
    bo_spec = pl.BlockSpec((1, OUTPUT), lambda i: (0, 0))
    out_spec = pl.BlockSpec((tile_b, OUTPUT), lambda i: (i, 0))

    def run(semantics):
        return pl.pallas_call(
            _mlp_kernel,
            out_shape=jax.ShapeDtypeStruct((b_pad, OUTPUT), jnp.float32),
            grid=(num_tiles,),
            in_specs=[x_spec,
                      w1_spec, bh_spec,
                      wh_spec, bh_spec,
                      wh_spec, bh_spec,
                      wo_spec, bo_spec],
            out_specs=out_spec,
            compiler_params=pltpu.CompilerParams(dimension_semantics=semantics),
        )(x_in,
          packed_params["w1"], packed_params["b1"],
          packed_params["w2"], packed_params["b2"],
          packed_params["w3"], packed_params["b3"],
          packed_params["wo"], packed_params["bo"])

    semantics = _batch_axis_semantics(num_tiles)
    try:
        out = run(semantics)
    except Exception:
        if semantics == ("arbitrary",):
            raise
        out = run(("arbitrary",))                    # safe fallback off CORE_PARALLEL

    return out[:B]                                   # row-only slice; cols already 12


def init_params(key):
    """Deterministic init mirroring nn.Linear defaults; weights stored transposed
    vs PyTorch, i.e. (in_features, out_features), so each layer is y = x @ W + b."""
    dims = [(INPUTS, H1), (H1, H2), (H2, H3), (H3, OUTPUT)]
    names = ["1", "2", "3", "o"]
    params = {}
    for (fan_in, fan_out), n in zip(dims, names):
        key, kw, kb = jax.random.split(key, 3)
        bound = 1.0 / jnp.sqrt(fan_in)
        params[f"w{n}"] = jax.random.uniform(
            kw, (fan_in, fan_out), jnp.float32, -bound, bound)
        params[f"b{n}"] = jax.random.uniform(
            kb, (1, fan_out), jnp.float32, -bound, bound)
    return params


def reference_forward(x, params):
    h = jnp.maximum(x @ params["w1"] + params["b1"], 0.0)
    h = jnp.maximum(h @ params["w2"] + params["b2"], 0.0)
    h = jnp.maximum(h @ params["w3"] + params["b3"], 0.0)
    return h @ params["wo"] + params["bo"]


if __name__ == "__main__":
    key = jax.random.PRNGKey(0)
    kp, kx1, kx2 = jax.random.split(key, 3)
    params = init_params(kp)
    packed = prepare_params(params)

    # Small batch matching the module's per-step usage.
    B = 8
    x = jax.random.normal(kx1, (B, INPUTS), jnp.float32)
    out = jax.block_until_ready(initial_policy_forward(x, packed))
    ref = reference_forward(x, params)
    assert out.shape == (B, OUTPUT)
    # bf16 matmul operands (f32 accumulation) -> loosened tolerance vs f32 ref.
    assert jnp.allclose(out, ref, atol=5e-2, rtol=5e-2), \
        float(jnp.max(jnp.abs(out - ref)))

    # Non-multiple-of-8 batch to exercise the pad-to-8 / ragged-tile path.
    B2 = 20
    x2 = jax.random.normal(kx2, (B2, INPUTS), jnp.float32)
    out2 = jax.block_until_ready(initial_policy_forward(x2, packed))
    ref2 = reference_forward(x2, params)
    assert out2.shape == (B2, OUTPUT)
    assert jnp.allclose(out2, ref2, atol=5e-2, rtol=5e-2), \
        float(jnp.max(jnp.abs(out2 - ref2)))

    print("KERNEL_OK")
</pallas_src>

<mosaic_0001>
module attributes {stable_mosaic.version = 11 : i64} {
  func.func @_mlp_kernel(%arg0: i32, %arg1: memref<8x37xf32, #tpu.memory_space<vmem>>, %arg2: memref<37x128xbf16, #tpu.memory_space<vmem>>, %arg3: memref<1x128xf32, #tpu.memory_space<vmem>>, %arg4: memref<128x128xbf16, #tpu.memory_space<vmem>>, %arg5: memref<1x128xf32, #tpu.memory_space<vmem>>, %arg6: memref<128x128xbf16, #tpu.memory_space<vmem>>, %arg7: memref<1x128xf32, #tpu.memory_space<vmem>>, %arg8: memref<128x12xbf16, #tpu.memory_space<vmem>>, %arg9: memref<1x12xf32, #tpu.memory_space<vmem>>, %arg10: memref<8x12xf32, #tpu.memory_space<vmem>>) attributes {dimension_semantics = [#tpu.dimension_semantics<arbitrary>], iteration_bounds = array<i64: 1>, scalar_prefetch = 0 : i64, scratch_operands = 0 : i64, tpu.core_type = #tpu.core_type<tc>, window_params = [{transform_indices = @transform_0, window_bounds = array<i64: 8, 37>}, {pipeline_mode = #tpu.pipeline_mode<synchronous>, transform_indices = @transform_1, window_bounds = array<i64: 37, 128>}, {pipeline_mode = #tpu.pipeline_mode<synchronous>, transform_indices = @transform_2, window_bounds = array<i64: 1, 128>}, {pipeline_mode = #tpu.pipeline_mode<synchronous>, transform_indices = @transform_3, window_bounds = array<i64: 128, 128>}, {pipeline_mode = #tpu.pipeline_mode<synchronous>, transform_indices = @transform_4, window_bounds = array<i64: 1, 128>}, {pipeline_mode = #tpu.pipeline_mode<synchronous>, transform_indices = @transform_5, window_bounds = array<i64: 128, 128>}, {pipeline_mode = #tpu.pipeline_mode<synchronous>, transform_indices = @transform_6, window_bounds = array<i64: 1, 128>}, {pipeline_mode = #tpu.pipeline_mode<synchronous>, transform_indices = @transform_7, window_bounds = array<i64: 128, 12>}, {pipeline_mode = #tpu.pipeline_mode<synchronous>, transform_indices = @transform_8, window_bounds = array<i64: 1, 12>}, {transform_indices = @transform_9, window_bounds = array<i64: 8, 12>}]} {
    %c0 = arith.constant 0 : index
    %c0_0 = arith.constant 0 : index
    %0 = vector.load %arg1[%c0, %c0_0] : memref<8x37xf32, #tpu.memory_space<vmem>>, vector<8x37xf32>
    %1 = arith.truncf %0 : vector<8x37xf32> to vector<8x37xbf16>
    %c0_1 = arith.constant 0 : index
    %c0_2 = arith.constant 0 : index
    %2 = vector.load %arg2[%c0_1, %c0_2] : memref<37x128xbf16, #tpu.memory_space<vmem>>, vector<37x128xbf16>
    %cst = arith.constant dense<0.000000e+00> : vector<8x128xf32>
    %3 = tpu.matmul %1, %2, %cst {dimension_numbers = #tpu.dot_dimension_numbers<[1], [0], [0], [1], [0, 0, 1, 1], [], []>} : vector<8x37xbf16>, vector<37x128xbf16>, vector<8x128xf32> -> vector<8x128xf32>
    %c0_3 = arith.constant 0 : index
    %c0_4 = arith.constant 0 : index
    %4 = vector.load %arg3[%c0_3, %c0_4] : memref<1x128xf32, #tpu.memory_space<vmem>>, vector<1x128xf32>
    %5 = vector.broadcast %4 : vector<1x128xf32> to vector<8x128xf32>
    %6 = arith.addf %3, %5 : vector<8x128xf32>
    %cst_5 = arith.constant 0.000000e+00 : f32
    %7 = vector.broadcast %cst_5 : f32 to vector<8x128xf32>
    %8 = arith.maximumf %6, %7 : vector<8x128xf32>
    %9 = arith.truncf %8 : vector<8x128xf32> to vector<8x128xbf16>
    %c0_6 = arith.constant 0 : index
    %c0_7 = arith.constant 0 : index
    %10 = vector.load %arg4[%c0_6, %c0_7] : memref<128x128xbf16, #tpu.memory_space<vmem>>, vector<128x128xbf16>
    %cst_8 = arith.constant dense<0.000000e+00> : vector<8x128xf32>
    %11 = tpu.matmul %9, %10, %cst_8 {dimension_numbers = #tpu.dot_dimension_numbers<[1], [0], [0], [1], [0, 0, 1, 1], [], []>} : vector<8x128xbf16>, vector<128x128xbf16>, vector<8x128xf32> -> vector<8x128xf32>
    %c0_9 = arith.constant 0 : index
    %c0_10 = arith.constant 0 : index
    %12 = vector.load %arg5[%c0_9, %c0_10] : memref<1x128xf32, #tpu.memory_space<vmem>>, vector<1x128xf32>
    %13 = vector.broadcast %12 : vector<1x128xf32> to vector<8x128xf32>
    %14 = arith.addf %11, %13 : vector<8x128xf32>
    %cst_11 = arith.constant 0.000000e+00 : f32
    %15 = vector.broadcast %cst_11 : f32 to vector<8x128xf32>
    %16 = arith.maximumf %14, %15 : vector<8x128xf32>
    %17 = arith.truncf %16 : vector<8x128xf32> to vector<8x128xbf16>
    %c0_12 = arith.constant 0 : index
    %c0_13 = arith.constant 0 : index
    %18 = vector.load %arg6[%c0_12, %c0_13] : memref<128x128xbf16, #tpu.memory_space<vmem>>, vector<128x128xbf16>
    %cst_14 = arith.constant dense<0.000000e+00> : vector<8x128xf32>
    %19 = tpu.matmul %17, %18, %cst_14 {dimension_numbers = #tpu.dot_dimension_numbers<[1], [0], [0], [1], [0, 0, 1, 1], [], []>} : vector<8x128xbf16>, vector<128x128xbf16>, vector<8x128xf32> -> vector<8x128xf32>
    %c0_15 = arith.constant 0 : index
    %c0_16 = arith.constant 0 : index
    %20 = vector.load %arg7[%c0_15, %c0_16] : memref<1x128xf32, #tpu.memory_space<vmem>>, vector<1x128xf32>
    %21 = vector.broadcast %20 : vector<1x128xf32> to vector<8x128xf32>
    %22 = arith.addf %19, %21 : vector<8x128xf32>
    %cst_17 = arith.constant 0.000000e+00 : f32
    %23 = vector.broadcast %cst_17 : f32 to vector<8x128xf32>
    %24 = arith.maximumf %22, %23 : vector<8x128xf32>
    %25 = arith.truncf %24 : vector<8x128xf32> to vector<8x128xbf16>
    %c0_18 = arith.constant 0 : index
    %c0_19 = arith.constant 0 : index
    %26 = vector.load %arg8[%c0_18, %c0_19] : memref<128x12xbf16, #tpu.memory_space<vmem>>, vector<128x12xbf16>
    %cst_20 = arith.constant dense<0.000000e+00> : vector<8x12xf32>
    %27 = tpu.matmul %25, %26, %cst_20 {dimension_numbers = #tpu.dot_dimension_numbers<[1], [0], [0], [1], [0, 0, 1, 1], [], []>} : vector<8x128xbf16>, vector<128x12xbf16>, vector<8x12xf32> -> vector<8x12xf32>
    %c0_21 = arith.constant 0 : index
    %c0_22 = arith.constant 0 : index
    %28 = vector.load %arg9[%c0_21, %c0_22] : memref<1x12xf32, #tpu.memory_space<vmem>>, vector<1x12xf32>
    %29 = vector.broadcast %28 : vector<1x12xf32> to vector<8x12xf32>
    %30 = arith.addf %27, %29 : vector<8x12xf32>
    %c0_23 = arith.constant 0 : index
    %c0_24 = arith.constant 0 : index
    %31 = vector.load %arg10[%c0_23, %c0_24] : memref<8x12xf32, #tpu.memory_space<vmem>>, vector<8x12xf32>
    tpu.vector_store %arg10[%c0_23, %c0_24], %30 {strides = array<i32>} : memref<8x12xf32, #tpu.memory_space<vmem>>, vector<8x12xf32>,
    return
  }
  func.func @transform_0(%arg0: i32) -> (i32, i32) {
    %c0_i32 = arith.constant 0 : i32
    %c0_i32_0 = arith.constant 0 : i32
    return %arg0, %c0_i32 : i32, i32
  }
  func.func @transform_1(%arg0: i32) -> (i32, i32) {
    %c0_i32 = arith.constant 0 : i32
    %c0_i32_0 = arith.constant 0 : i32
    %c0_i32_1 = arith.constant 0 : i32
    return %c0_i32, %c0_i32_0 : i32, i32
  }
  func.func @transform_2(%arg0: i32) -> (i32, i32) {
    %c0_i32 = arith.constant 0 : i32
    %c0_i32_0 = arith.constant 0 : i32
    %c0_i32_1 = arith.constant 0 : i32
    return %c0_i32, %c0_i32_0 : i32, i32
  }
  func.func @transform_3(%arg0: i32) -> (i32, i32) {
    %c0_i32 = arith.constant 0 : i32
    %c0_i32_0 = arith.constant 0 : i32
    %c0_i32_1 = arith.constant 0 : i32
    return %c0_i32, %c0_i32_0 : i32, i32
  }
  func.func @transform_4(%arg0: i32) -> (i32, i32) {
    %c0_i32 = arith.constant 0 : i32
    %c0_i32_0 = arith.constant 0 : i32
    %c0_i32_1 = arith.constant 0 : i32
    return %c0_i32, %c0_i32_0 : i32, i32
  }
  func.func @transform_5(%arg0: i32) -> (i32, i32) {
    %c0_i32 = arith.constant 0 : i32
    %c0_i32_0 = arith.constant 0 : i32
    %c0_i32_1 = arith.constant 0 : i32
    return %c0_i32, %c0_i32_0 : i32, i32
  }
  func.func @transform_6(%arg0: i32) -> (i32, i32) {
    %c0_i32 = arith.constant 0 : i32
    %c0_i32_0 = arith.constant 0 : i32
    %c0_i32_1 = arith.constant 0 : i32
    return %c0_i32, %c0_i32_0 : i32, i32
  }
  func.func @transform_7(%arg0: i32) -> (i32, i32) {
    %c0_i32 = arith.constant 0 : i32
    %c0_i32_0 = arith.constant 0 : i32
    %c0_i32_1 = arith.constant 0 : i32
    return %c0_i32, %c0_i32_0 : i32, i32
  }
  func.func @transform_8(%arg0: i32) -> (i32, i32) {
    %c0_i32 = arith.constant 0 : i32
    %c0_i32_0 = arith.constant 0 : i32
    %c0_i32_1 = arith.constant 0 : i32
    return %c0_i32, %c0_i32_0 : i32, i32
  }
  func.func @transform_9(%arg0: i32) -> (i32, i32) {
    %c0_i32 = arith.constant 0 : i32
    %c0_i32_0 = arith.constant 0 : i32
    return %arg0, %c0_i32 : i32, i32
  }
}

</mosaic_0001>

<llo_original>
// kernel: tpu_custom_call.1
$region0: #{tpu_custom_call.1}
  #allocation0 [shape = 'u32[]', space=smem, size = 0x4, offset = 0x4, fixed_abs, tag = 'smem constant byte address 0x4 - core index']
  #allocation1 [shape = 'u32[144,128]{1,0:T(1,128)}', space=vmem, size = 0x12000, scoped, tag = 'internal scratch']
  %s0 = inlined_call_operand.vmem [shape: f32[8,37], index: 0, kind: input, shape index: {}]
  %s1 = inlined_call_operand.hbm [shape: bf16[37,128], index: 1, kind: input, shape index: {}]
  %s2 = inlined_call_operand.vmem [shape: f32[1,128], index: 2, kind: input, shape index: {}]
  %s3 = inlined_call_operand.vmem [shape: bf16[128,128], index: 3, kind: input, shape index: {}]
  %s4 = inlined_call_operand.vmem [shape: f32[1,128], index: 4, kind: input, shape index: {}]
  %s5 = inlined_call_operand.hbm [shape: bf16[128,128], index: 5, kind: input, shape index: {}]
  %s6 = inlined_call_operand.vmem [shape: f32[1,128], index: 6, kind: input, shape index: {}]
  %s7 = inlined_call_operand.vmem [shape: bf16[128,12], index: 7, kind: input, shape index: {}]
  %s8 = inlined_call_operand.vmem [shape: f32[1,12], index: 8, kind: input, shape index: {}]
  %s9 = inlined_call_operand.hbm [shape: f32[8,12], index: 9, kind: output, shape index: {}]
  %s10 = sld [smem:[#allocation0]]
  $region54: #{tpu_custom_call.1} parent=0
    _
  %s12 = ssub.s32 1, %s10
  %s13 = scalar_select 0, %s12, %s10
  $region1: #{tpu_custom_call.1} parent=0
    #allocation2 [shape = 'u8[10240]{0}', space=vmem, size = 0x2800, scoped, tag = 'input window, operand 1, single buffered']
    #allocation3 [shape = 's32[1]{0}', space=sflag, size = 0x4, scoped, tag = 'scoped memory for tpu_custom_call.1']
    #allocation4 [shape = 's32[1]{0}', space=sflag, size = 0x4, scoped, tag = 'scoped memory for tpu_custom_call.1']
    #allocation5 [shape = 'u8[32768]{0}', space=vmem, size = 0x8000, scoped, tag = 'input window, operand 5, single buffered']
    #allocation6 [shape = 's32[1]{0}', space=sflag, size = 0x4, scoped, tag = 'scoped memory for tpu_custom_call.1']
    #allocation7 [shape = 'u8[4096]{0}', space=vmem, size = 0x1000, scoped, tag = 'output window, operand 0, single buffered']
    %14 = vsyncpa [#allocation3], 0
    %15 = vsyncpa [#allocation6], 0
    %16 = vsyncpa [#allocation4], 0
    // Predicated region
    $region2: #{tpu_custom_call.1} parent=1 // pred_check
      _
    $region3: #{tpu_custom_call.1} parent=1 // pred_check_branch
      %18 = sbr.rel (0) target = $region5
    $region4: #{tpu_custom_call.1} parent=1 // pred_region
      _
    $region5: #{tpu_custom_call.1} parent=1 // pred_fallthru
      _
    // Predicated region
    $region6: #{tpu_custom_call.1} parent=1 // pred_check
      _
    $region7: #{tpu_custom_call.1} parent=1 // pred_check_branch
      %20 = sbr.rel (0) target = $region9
    $region8: #{tpu_custom_call.1} parent=1 // pred_region
      %s22 = ssub.s32 320, 320
      %23 = vsyncadd [#allocation3], %s22
      %s24 = sshll.u32 [#allocation2], 4
      %s25 = int_to_ptr.vmem [resolvable:$true] %s24
      %30 = dma.hbm_to_vmem [thread:$0]  %s1, 320, %s25, [#allocation3], 64, 64, 4
    $region9: #{tpu_custom_call.1} parent=1 // pred_fallthru
      _
    // Predicated region
    $region10: #{tpu_custom_call.1} parent=1 // pred_check
      _
    $region11: #{tpu_custom_call.1} parent=1 // pred_check_branch
      %32 = sbr.rel (0) target = $region13
    $region12: #{tpu_custom_call.1} parent=1 // pred_region
      _
    $region13: #{tpu_custom_call.1} parent=1 // pred_fallthru
      _
    // Predicated region
    $region14: #{tpu_custom_call.1} parent=1 // pred_check
      _
    $region15: #{tpu_custom_call.1} parent=1 // pred_check_branch
      %34 = sbr.rel (0) target = $region17
    $region16: #{tpu_custom_call.1} parent=1 // pred_region
      _
    $region17: #{tpu_custom_call.1} parent=1 // pred_fallthru
      _
    // Predicated region
    $region18: #{tpu_custom_call.1} parent=1 // pred_check
      _
    $region19: #{tpu_custom_call.1} parent=1 // pred_check_branch
      %36 = sbr.rel (0) target = $region21
    $region20: #{tpu_custom_call.1} parent=1 // pred_region
      _
    $region21: #{tpu_custom_call.1} parent=1 // pred_fallthru
      _
    // Predicated region
    $region22: #{tpu_custom_call.1} parent=1 // pred_check
      _
    $region23: #{tpu_custom_call.1} parent=1 // pred_check_branch
      %38 = sbr.rel (0) target = $region25
    $region24: #{tpu_custom_call.1} parent=1 // pred_region
      %s40 = ssub.s32 1024, 1024
      %41 = vsyncadd [#allocation6], %s40
      %s42 = sshll.u32 [#allocation5], 4
      %s43 = int_to_ptr.vmem [resolvable:$true] %s42
      %48 = dma.hbm_to_vmem [thread:$0]  %s5, 1024, %s43, [#allocation6], 64, 64, 4
    $region25: #{tpu_custom_call.1} parent=1 // pred_fallthru
      _
    // Predicated region
    $region26: #{tpu_custom_call.1} parent=1 // pred_check
      _
    $region27: #{tpu_custom_call.1} parent=1 // pred_check_branch
      %50 = sbr.rel (0) target = $region29
    $region28: #{tpu_custom_call.1} parent=1 // pred_region
      _
    $region29: #{tpu_custom_call.1} parent=1 // pred_fallthru
      _
    // Predicated region
    $region30: #{tpu_custom_call.1} parent=1 // pred_check
      _
    $region31: #{tpu_custom_call.1} parent=1 // pred_check_branch
      %52 = sbr.rel (0) target = $region33
    $region32: #{tpu_custom_call.1} parent=1 // pred_region
      _
    $region33: #{tpu_custom_call.1} parent=1 // pred_fallthru
      _
    // Predicated region
    $region34: #{tpu_custom_call.1} parent=1 // pred_check
      _
    $region35: #{tpu_custom_call.1} parent=1 // pred_check_branch
      %54 = sbr.rel (0) target = $region37
    $region36: #{tpu_custom_call.1} parent=1 // pred_region
      _
    $region37: #{tpu_custom_call.1} parent=1 // pred_fallthru
      _
    // Predicated region
    $region38: #{tpu_custom_call.1} parent=1 // pred_check
      _
    $region39: #{tpu_custom_call.1} parent=1 // pred_check_branch
      %56 = sbr.rel (0) target = $region41
    $region40: #{tpu_custom_call.1} parent=1 // pred_region
      %57 = dma.done [#allocation3], 320
    $region41: #{tpu_custom_call.1} parent=1 // pred_fallthru
      _
    // Predicated region
    $region42: #{tpu_custom_call.1} parent=1 // pred_check
      _
    $region43: #{tpu_custom_call.1} parent=1 // pred_check_branch
      %59 = sbr.rel (0) target = $region45
    $region44: #{tpu_custom_call.1} parent=1 // pred_region
      %60 = dma.done [#allocation6], 1024
    $region45: #{tpu_custom_call.1} parent=1 // pred_fallthru
      _
    %v62 = vld [vmem:[%s0] sm:$0xff]
    %v63 = vpack.c.bf16 %v62, %v62
    %v64 = vld [vmem:[#allocation2] sm:$0xf]
    %v65 = vld [vmem:[#allocation2 + $0x4] sm:$0xf]
    %v66 = vld [vmem:[#allocation2 + $0x8] sm:$0xf]
    %v67 = vld [vmem:[#allocation2 + $0xc] sm:$0xf]
    %v68 = vld [vmem:[#allocation2 + $0x10] sm:$0x7]
    %v69 = vld [vmem:[%s2] sm:$0x1]
    %v71 = vlaneseq
    %v72 = vshrl.u32 %v71, 7
    %v73 = vsub.s32 0, %v72
    %v74 = vrot.slane %v69, %v73
    %v81 = vunpack.c.l.b16 %v64
    %v82 = vunpack.c.l.b16 %v65
    %v83 = vunpack.c.l.b16 %v66
    %v84 = vunpack.c.l.b16 %v67
    %v85 = vunpack.c.l.b16 %v68
    %v86 = vpack.c.b16 %v82, %v81
    %v87 = vpack.c.b16 %v84, %v83
    %v88 = vpack.c.b16 %v85, %v85
    %vm91 = vcmask 302080
    %v93 = vsel %vm91, %v63, 0
    %vm95 = vcmask 1041408
    %vm96 = vcmask 1042432
    %v97 = vsel %vm95, 4294967295, 65535
    %v98 = vsel %vm96, %v97, 0
    %v100 = vand.u32 %v88, %v98
    %102 = vmatprep.subr.bf16.mxu0 0
    %103 = vmatpush1.bf16.msra.mxu0 %v86
    %104 = vmatprep.subr.bf16.mxu0 0
    %105 = vmatpush1.bf16.msra.mxu0 %v87
    %106 = vmatprep.subr.bf16.mxu0 0
    %107 = vmatpush1.bf16.msra.mxu0 %v100
    %108 = vmatprep.subr.bf16.mxu0 0
    %109 = vmatpush1.bf16.msra.mxu0 0
    %110 = vmatprep.subr.bf16.mxu0 0
    %111 = vmatpush1.bf16.msra.mxu0 0
    %112 = vmatprep.subr.bf16.mxu0 0
    %113 = vmatpush1.bf16.msra.mxu0 0
    %114 = vmatprep.subr.bf16.mxu0 0
    %115 = vmatpush1.bf16.msra.mxu0 0
    %116 = vmatprep.subr.bf16.mxu0 0
    %117 = vmatpush1.bf16.msra.mxu0 0
    %118 = vmatprep.subr.bf16.mxu0 0
    %119 = vmatpush1.bf16.msra.mxu0 0
    %120 = vmatprep.subr.bf16.mxu0 0
    %121 = vmatpush1.bf16.msra.mxu0 0
    %122 = vmatprep.subr.bf16.mxu0 0
    %123 = vmatpush1.bf16.msra.mxu0 0
    %124 = vmatprep.subr.bf16.mxu0 0
    %125 = vmatpush1.bf16.msra.mxu0 0
    %126 = vmatprep.subr.bf16.mxu0 0
    %127 = vmatpush1.bf16.msra.mxu0 0
    %128 = vmatprep.subr.bf16.mxu0 0
    %129 = vmatpush1.bf16.msra.mxu0 0
    %130 = vmatprep.subr.bf16.mxu0 0
    %131 = vmatpush1.bf16.msra.mxu0 0
    %132 = vmatprep.subr.bf16.mxu0 0
    %133 = vmatpush1.bf16.msra.mxu0 0
    %134 = vmatprep.mubr.bf16.mxu0 0
    %135 = vmatmul.mubr.bf16.gmra.mrb[0].mxu0 %v93
    %v136 = vpop.f32.mrb[0].mxu0
    %v137 = vadd.f32 %v74, %v136
    %v138 = vpop.f32.mrb[0].mxu0
    %v139 = vpop.f32.mrb[0].mxu0
    %v140 = vpop.f32.mrb[0].mxu0
    %141 = vdwg.mxu0
    %v142 = vmax.f32 %v137, 0.0
    %v143 = vpack.c.bf16 %v142, %v142
    %v144 = vld [vmem:[%s3] sm:$0xf]
    %v145 = vld [vmem:[%s3 + $0x4] sm:$0xf]
    %v146 = vld [vmem:[%s3 + $0x8] sm:$0xf]
    %v147 = vld [vmem:[%s3 + $0xc] sm:$0xf]
    %v148 = vld [vmem:[%s3 + $0x10] sm:$0xf]
    %v149 = vld [vmem:[%s3 + $0x14] sm:$0xf]
    %v150 = vld [vmem:[%s3 + $0x18] sm:$0xf]
    %v151 = vld [vmem:[%s3 + $0x1c] sm:$0xf]
    %v152 = vld [vmem:[%s3 + $0x20] sm:$0xf]
    %v153 = vld [vmem:[%s3 + $0x24] sm:$0xf]
    %v154 = vld [vmem:[%s3 + $0x28] sm:$0xf]
    %v155 = vld [vmem:[%s3 + $0x2c] sm:$0xf]
    %v156 = vld [vmem:[%s3 + $0x30] sm:$0xf]
    %v157 = vld [vmem:[%s3 + $0x34] sm:$0xf]
    %v158 = vld [vmem:[%s3 + $0x38] sm:$0xf]
    %v159 = vld [vmem:[%s3 + $0x3c] sm:$0xf]
    %v160 = vld [vmem:[%s4] sm:$0x1]
    %v162 = vlaneseq
    %v163 = vshrl.u32 %v162, 7
    %v164 = vsub.s32 0, %v163
    %v165 = vrot.slane %v160, %v164
    %v183 = vunpack.c.l.b16 %v144
    %v184 = vunpack.c.l.b16 %v145
    %v185 = vunpack.c.l.b16 %v146
    %v186 = vunpack.c.l.b16 %v147
    %v187 = vunpack.c.l.b16 %v148
    %v188 = vunpack.c.l.b16 %v149
    %v189 = vunpack.c.l.b16 %v150
    %v190 = vunpack.c.l.b16 %v151
    %v191 = vunpack.c.l.b16 %v152
    %v192 = vunpack.c.l.b16 %v153
    %v193 = vunpack.c.l.b16 %v154
    %v194 = vunpack.c.l.b16 %v155
    %v195 = vunpack.c.l.b16 %v156
    %v196 = vunpack.c.l.b16 %v157
    %v197 = vunpack.c.l.b16 %v158
    %v198 = vunpack.c.l.b16 %v159
    %v199 = vpack.c.b16 %v184, %v183
    %v200 = vpack.c.b16 %v186, %v185
    %v201 = vpack.c.b16 %v188, %v187
    %v202 = vpack.c.b16 %v190, %v189
    %v203 = vpack.c.b16 %v192, %v191
    %v204 = vpack.c.b16 %v194, %v193
    %v205 = vpack.c.b16 %v196, %v195
    %v206 = vpack.c.b16 %v198, %v197
    %215 = vmatprep.subr.bf16.mxu0 0
    %216 = vmatpush1.bf16.msra.mxu0 %v199
    %217 = vmatprep.subr.bf16.mxu0 0
    %218 = vmatpush1.bf16.msra.mxu0 %v200
    %219 = vmatprep.subr.bf16.mxu0 0
    %220 = vmatpush1.bf16.msra.mxu0 %v201
    %221 = vmatprep.subr.bf16.mxu0 0
    %222 = vmatpush1.bf16.msra.mxu0 %v202
    %223 = vmatprep.subr.bf16.mxu0 0
    %224 = vmatpush1.bf16.msra.mxu0 %v203
    %225 = vmatprep.subr.bf16.mxu0 0
    %226 = vmatpush1.bf16.msra.mxu0 %v204
    %227 = vmatprep.subr.bf16.mxu0 0
    %228 = vmatpush1.bf16.msra.mxu0 %v205
    %229 = vmatprep.subr.bf16.mxu0 0
    %230 = vmatpush1.bf16.msra.mxu0 %v206
    %231 = vmatprep.subr.bf16.mxu0 0
    %232 = vmatpush1.bf16.msra.mxu0 0
    %233 = vmatprep.subr.bf16.mxu0 0
    %234 = vmatpush1.bf16.msra.mxu0 0
    %235 = vmatprep.subr.bf16.mxu0 0
    %236 = vmatpush1.bf16.msra.mxu0 0
    %237 = vmatprep.subr.bf16.mxu0 0
    %238 = vmatpush1.bf16.msra.mxu0 0
    %239 = vmatprep.subr.bf16.mxu0 0
    %240 = vmatpush1.bf16.msra.mxu0 0
    %241 = vmatprep.subr.bf16.mxu0 0
    %242 = vmatpush1.bf16.msra.mxu0 0
    %243 = vmatprep.subr.bf16.mxu0 0
    %244 = vmatpush1.bf16.msra.mxu0 0
    %245 = vmatprep.subr.bf16.mxu0 0
    %246 = vmatpush1.bf16.msra.mxu0 0
    %247 = vmatprep.mubr.bf16.mxu0 0
    %248 = vmatmul.mubr.bf16.gmra.mrb[0].mxu0 %v143
    %v249 = vpop.f32.mrb[0].mxu0
    %v250 = vadd.f32 %v165, %v249
    %v251 = vpop.f32.mrb[0].mxu0
    %v252 = vpop.f32.mrb[0].mxu0
    %v253 = vpop.f32.mrb[0].mxu0
    %254 = vdwg.mxu0
    %v255 = vmax.f32 %v250, 0.0
    %v256 = vpack.c.bf16 %v255, %v255
    %v257 = vld [vmem:[#allocation5] sm:$0xf]
    %v258 = vld [vmem:[#allocation5 + $0x4] sm:$0xf]
    %v259 = vld [vmem:[#allocation5 + $0x8] sm:$0xf]
    %v260 = vld [vmem:[#allocation5 + $0xc] sm:$0xf]
    %v261 = vld [vmem:[#allocation5 + $0x10] sm:$0xf]
    %v262 = vld [vmem:[#allocation5 + $0x14] sm:$0xf]
    %v263 = vld [vmem:[#allocation5 + $0x18] sm:$0xf]
    %v264 = vld [vmem:[#allocation5 + $0x1c] sm:$0xf]
    %v265 = vld [vmem:[#allocation5 + $0x20] sm:$0xf]
    %v266 = vld [vmem:[#allocation5 + $0x24] sm:$0xf]
    %v267 = vld [vmem:[#allocation5 + $0x28] sm:$0xf]
    %v268 = vld [vmem:[#allocation5 + $0x2c] sm:$0xf]
    %v269 = vld [vmem:[#allocation5 + $0x30] sm:$0xf]
    %v270 = vld [vmem:[#allocation5 + $0x34] sm:$0xf]
    %v271 = vld [vmem:[#allocation5 + $0x38] sm:$0xf]
    %v272 = vld [vmem:[#allocation5 + $0x3c] sm:$0xf]
    %v273 = vld [vmem:[%s6] sm:$0x1]
    %v275 = vlaneseq
    %v276 = vshrl.u32 %v275, 7
    %v277 = vsub.s32 0, %v276
    %v278 = vrot.slane %v273, %v277
    %v296 = vunpack.c.l.b16 %v257
    %v297 = vunpack.c.l.b16 %v258
    %v298 = vunpack.c.l.b16 %v259
    %v299 = vunpack.c.l.b16 %v260
    %v300 = vunpack.c.l.b16 %v261
    %v301 = vunpack.c.l.b16 %v262
    %v302 = vunpack.c.l.b16 %v263
    %v303 = vunpack.c.l.b16 %v264
    %v304 = vunpack.c.l.b16 %v265
    %v305 = vunpack.c.l.b16 %v266
    %v306 = vunpack.c.l.b16 %v267
    %v307 = vunpack.c.l.b16 %v268
    %v308 = vunpack.c.l.b16 %v269
    %v309 = vunpack.c.l.b16 %v270
    %v310 = vunpack.c.l.b16 %v271
    %v311 = vunpack.c.l.b16 %v272
    %v312 = vpack.c.b16 %v297, %v296
    %v313 = vpack.c.b16 %v299, %v298
    %v314 = vpack.c.b16 %v301, %v300
    %v315 = vpack.c.b16 %v303, %v302
    %v316 = vpack.c.b16 %v305, %v304
    %v317 = vpack.c.b16 %v307, %v306
    %v318 = vpack.c.b16 %v309, %v308
    %v319 = vpack.c.b16 %v311, %v310
    %328 = vmatprep.subr.bf16.mxu0 0
    %329 = vmatpush1.bf16.msra.mxu0 %v312
    %330 = vmatprep.subr.bf16.mxu0 0
    %331 = vmatpush1.bf16.msra.mxu0 %v313
    %332 = vmatprep.subr.bf16.mxu0 0
    %333 = vmatpush1.bf16.msra.mxu0 %v314
    %334 = vmatprep.subr.bf16.mxu0 0
    %335 = vmatpush1.bf16.msra.mxu0 %v315
    %336 = vmatprep.subr.bf16.mxu0 0
    %337 = vmatpush1.bf16.msra.mxu0 %v316
    %338 = vmatprep.subr.bf16.mxu0 0
    %339 = vmatpush1.bf16.msra.mxu0 %v317
    %340 = vmatprep.subr.bf16.mxu0 0
    %341 = vmatpush1.bf16.msra.mxu0 %v318
    %342 = vmatprep.subr.bf16.mxu0 0
    %343 = vmatpush1.bf16.msra.mxu0 %v319
    %344 = vmatprep.subr.bf16.mxu0 0
    %345 = vmatpush1.bf16.msra.mxu0 0
    %346 = vmatprep.subr.bf16.mxu0 0
    %347 = vmatpush1.bf16.msra.mxu0 0
    %348 = vmatprep.subr.bf16.mxu0 0
    %349 = vmatpush1.bf16.msra.mxu0 0
    %350 = vmatprep.subr.bf16.mxu0 0
    %351 = vmatpush1.bf16.msra.mxu0 0
    %352 = vmatprep.subr.bf16.mxu0 0
    %353 = vmatpush1.bf16.msra.mxu0 0
    %354 = vmatprep.subr.bf16.mxu0 0
    %355 = vmatpush1.bf16.msra.mxu0 0
    %356 = vmatprep.subr.bf16.mxu0 0
    %357 = vmatpush1.bf16.msra.mxu0 0
    %358 = vmatprep.subr.bf16.mxu0 0
    %359 = vmatpush1.bf16.msra.mxu0 0
    %360 = vmatprep.mubr.bf16.mxu0 0
    %361 = vmatmul.mubr.bf16.gmra.mrb[0].mxu0 %v256
    %v362 = vpop.f32.mrb[0].mxu0
    %v363 = vadd.f32 %v278, %v362
    %v364 = vpop.f32.mrb[0].mxu0
    %v365 = vpop.f32.mrb[0].mxu0
    %v366 = vpop.f32.mrb[0].mxu0
    %367 = vdwg.mxu0
    %v368 = vmax.f32 %v363, 0.0
    %v369 = vpack.c.bf16 %v368, %v368
    %v370 = vld [vmem:[%s7] sm:$0xf]
    %v371 = vld [vmem:[%s7 + $0x4] sm:$0xf]
    %v372 = vld [vmem:[%s7 + $0x8] sm:$0xf]
    %v373 = vld [vmem:[%s7 + $0xc] sm:$0xf]
    %v374 = vld [vmem:[%s7 + $0x10] sm:$0xf]
    %v375 = vld [vmem:[%s7 + $0x14] sm:$0xf]
    %v376 = vld [vmem:[%s7 + $0x18] sm:$0xf]
    %v377 = vld [vmem:[%s7 + $0x1c] sm:$0xf]
    %v378 = vld [vmem:[%s7 + $0x20] sm:$0xf]
    %v379 = vld [vmem:[%s7 + $0x24] sm:$0xf]
    %v380 = vld [vmem:[%s7 + $0x28] sm:$0xf]
    %v381 = vld [vmem:[%s7 + $0x2c] sm:$0xf]
    %v382 = vld [vmem:[%s7 + $0x30] sm:$0xf]
    %v383 = vld [vmem:[%s7 + $0x34] sm:$0xf]
    %v384 = vld [vmem:[%s7 + $0x38] sm:$0xf]
    %v385 = vld [vmem:[%s7 + $0x3c] sm:$0xf]
    %v386 = vld [vmem:[%s8] sm:$0x1]
    %v388 = vlaneseq
    %v389 = vshrl.u32 %v388, 7
    %v390 = vsub.s32 0, %v389
    %v391 = vrot.slane %v386, %v390
    %v409 = vunpack.c.l.b16 %v370
    %v410 = vunpack.c.l.b16 %v371
    %v411 = vunpack.c.l.b16 %v372
    %v412 = vunpack.c.l.b16 %v373
    %v413 = vunpack.c.l.b16 %v374
    %v414 = vunpack.c.l.b16 %v375
    %v415 = vunpack.c.l.b16 %v376
    %v416 = vunpack.c.l.b16 %v377
    %v417 = vunpack.c.l.b16 %v378
    %v418 = vunpack.c.l.b16 %v379
    %v419 = vunpack.c.l.b16 %v380
    %v420 = vunpack.c.l.b16 %v381
    %v421 = vunpack.c.l.b16 %v382
    %v422 = vunpack.c.l.b16 %v383
    %v423 = vunpack.c.l.b16 %v384
    %v424 = vunpack.c.l.b16 %v385
    %v425 = vpack.c.b16 %v410, %v409
    %v426 = vpack.c.b16 %v412, %v411
    %v427 = vpack.c.b16 %v414, %v413
    %v428 = vpack.c.b16 %v416, %v415
    %v429 = vpack.c.b16 %v418, %v417
    %v430 = vpack.c.b16 %v420, %v419
    %v431 = vpack.c.b16 %v422, %v421
    %v432 = vpack.c.b16 %v424, %v423
    %441 = vmatprep.subr.bf16.mxu0 0
    %442 = vmatpush1.bf16.msra.mxu0 %v425
    %443 = vmatprep.subr.bf16.mxu0 0
    %444 = vmatpush1.bf16.msra.mxu0 %v426
    %445 = vmatprep.subr.bf16.mxu0 0
    %446 = vmatpush1.bf16.msra.mxu0 %v427
    %447 = vmatprep.subr.bf16.mxu0 0
    %448 = vmatpush1.bf16.msra.mxu0 %v428
    %449 = vmatprep.subr.bf16.mxu0 0
    %450 = vmatpush1.bf16.msra.mxu0 %v429
    %451 = vmatprep.subr.bf16.mxu0 0
    %452 = vmatpush1.bf16.msra.mxu0 %v430
    %453 = vmatprep.subr.bf16.mxu0 0
    %454 = vmatpush1.bf16.msra.mxu0 %v431
    %455 = vmatprep.subr.bf16.mxu0 0
    %456 = vmatpush1.bf16.msra.mxu0 %v432
    %457 = vmatprep.subr.bf16.mxu0 0
    %458 = vmatpush1.bf16.msra.mxu0 0
    %459 = vmatprep.subr.bf16.mxu0 0
    %460 = vmatpush1.bf16.msra.mxu0 0
    %461 = vmatprep.subr.bf16.mxu0 0
    %462 = vmatpush1.bf16.msra.mxu0 0
    %463 = vmatprep.subr.bf16.mxu0 0
    %464 = vmatpush1.bf16.msra.mxu0 0
    %465 = vmatprep.subr.bf16.mxu0 0
    %466 = vmatpush1.bf16.msra.mxu0 0
    %467 = vmatprep.subr.bf16.mxu0 0
    %468 = vmatpush1.bf16.msra.mxu0 0
    %469 = vmatprep.subr.bf16.mxu0 0
    %470 = vmatpush1.bf16.msra.mxu0 0
    %471 = vmatprep.subr.bf16.mxu0 0
    %472 = vmatpush1.bf16.msra.mxu0 0
    %473 = vmatprep.mubr.bf16.mxu0 0
    %474 = vmatmul.mubr.bf16.gmra.mrb[0].mxu0 %v369
    %v475 = vpop.f32.mrb[0].mxu0
    %v476 = vadd.f32 %v391, %v475
    %v477 = vpop.f32.mrb[0].mxu0
    %v478 = vpop.f32.mrb[0].mxu0
    %v479 = vpop.f32.mrb[0].mxu0
    %480 = vdwg.mxu0
    %vm481 = vcmask 97280
    %482 = vst.msk [vmem:[#allocation7] sm:$0xff] %vm481, %v476
    // Predicated region
    $region46: #{tpu_custom_call.1} parent=1 // pred_check
      _
    $region47: #{tpu_custom_call.1} parent=1 // pred_check_branch
      %484 = sbr.rel (0) target = $region49
    $region48: #{tpu_custom_call.1} parent=1 // pred_region
      %s486 = ssub.s32 128, 128
      %487 = vsyncadd [#allocation4], %s486
      %s489 = sshll.u32 [#allocation7], 4
      %s490 = int_to_ptr.vmem [resolvable:$true] %s489
      %492 = dma.vmem_to_hbm [thread:$0]  %s490, 128, %s9, [#allocation4]
    $region49: #{tpu_custom_call.1} parent=1 // pred_fallthru
      _
    // Predicated region
    $region50: #{tpu_custom_call.1} parent=1 // pred_check
      _
    $region51: #{tpu_custom_call.1} parent=1 // pred_check_branch
      %494 = sbr.rel (0) target = $region53
    $region52: #{tpu_custom_call.1} parent=1 // pred_region
      %495 = dma.done [#allocation4], 128
    $region53: #{tpu_custom_call.1} parent=1 // pred_fallthru
      _
    %496 = vsyncpa [#allocation3], 1
    %497 = vsyncpa [#allocation6], 1
    %498 = vsyncpa [#allocation4], 1

</llo_original>
